<compile_context>
chip_gen: v5e
topology: v5e:2x2
jax: 0.10.0
libtpu: 0.0.40
codegen_flags: <defaults>
</compile_context>

<pallas_src>
import jax
import jax.numpy as jnp
from jax.experimental import pallas as pl
from jax.experimental.pallas import tpu as pltpu

DS = 8     # scale_state_dim  (BipedalWalker scale vector, matches torch.ones([1, 8]))
DC = 24    # sim_obs_dim      (cfg.use_entire_obs = False -> control input is sim_obs)
DA = 4     # sim_action_dim
H = 32     # hidden width for scale_mlp / control_mlp ([32, 32], tanh)
LANES = 128
CLIP = 5.0
EPS = 1e-8

SCALE_LOG_STD = -2.3     # cfg.policy_spec['scale_log_std']
CONTROL_LOG_STD = -1.0   # cfg.policy_spec['control_log_std']


def _rup(n, m):
    return ((n + m - 1) // m) * m


def _cdiv(n, m):
    return (n + m - 1) // m


# ----------------------------------------------------------------------------
# Pallas kernel: fused block-diagonal (norm -> tanh MLP x2 -> head) for both
# branches over one batch tile.  3 bf16 matmuls total instead of 6 f32 ones.
# ----------------------------------------------------------------------------
def policy_kernel(x_ref, w_ref, p_ref, out_ref):
    # RunningNorm (reciprocal of std precomputed at pack time) + clip, in f32.
    x = x_ref[...]
    xn = jnp.clip((x - p_ref[0:1, :]) * p_ref[1:2, :], -CLIP, CLIP)

    # layer 1 (block-diag: scale 8->32 in cols 0-31, control 24->32 in cols 32-63)
    h = jnp.tanh(
        jnp.dot(xn.astype(jnp.bfloat16), w_ref[0:LANES, :],
                preferred_element_type=jnp.float32) + p_ref[2:3, :])
    # layer 2 (block-diag 32x32 + 32x32)
    h = jnp.tanh(
        jnp.dot(h.astype(jnp.bfloat16), w_ref[LANES:2 * LANES, :],
                preferred_element_type=jnp.float32) + p_ref[3:4, :])
    # fused head: lanes 0-7 scale mean (1 + 0.75*(hW+b) folded into scale/shift),
    #             lanes 8-11 control action mean, other lanes -> 0
    m = jnp.dot(h.astype(jnp.bfloat16), w_ref[2 * LANES:3 * LANES, :],
                preferred_element_type=jnp.float32)
    out_ref[...] = m * p_ref[4:5, :] + p_ref[5:6, :]


# ----------------------------------------------------------------------------
# One-time parameter packing (hoisted out of the forward hot path)
# ----------------------------------------------------------------------------
def pack_params(p):
    f32 = jnp.float32

    def vec(pairs):
        v = jnp.zeros((LANES,), f32)
        for (lo, a) in pairs:
            a = jnp.asarray(a, f32).reshape(-1)
            v = v.at[lo:lo + a.shape[0]].set(a)
        return v

    nm = vec([(0, p["s_nm"]), (DS, p["c_nm"])])
    inv = vec([(0, 1.0 / (jnp.asarray(p["s_ns"], f32) + EPS)),
               (DS, 1.0 / (jnp.asarray(p["c_ns"], f32) + EPS))])
    b1 = vec([(0, p["s_b1"]), (H, p["c_b1"])])
    b2 = vec([(0, p["s_b2"]), (H, p["c_b2"])])
    alpha = vec([(0, jnp.full((DS,), 0.75, f32)), (DS, jnp.full((DA,), 1.0, f32))])
    gamma = vec([(0, 1.0 + 0.75 * jnp.asarray(p["s_bh"], f32)),
                 (DS, p["c_bh"])])

    small = jnp.zeros((8, LANES), f32)
    for r, v in enumerate((nm, inv, b1, b2, alpha, gamma)):
        small = small.at[r].set(v)

    w1 = (jnp.zeros((LANES, LANES), f32)
          .at[:DS, :H].set(jnp.asarray(p["s_w1"], f32))
          .at[DS:DS + DC, H:2 * H].set(jnp.asarray(p["c_w1"], f32)))
    w2 = (jnp.zeros((LANES, LANES), f32)
          .at[:H, :H].set(jnp.asarray(p["s_w2"], f32))
          .at[H:2 * H, H:2 * H].set(jnp.asarray(p["c_w2"], f32)))
    wh = (jnp.zeros((LANES, LANES), f32)
          .at[:H, :DS].set(jnp.asarray(p["s_wh"], f32))
          .at[H:2 * H, DS:DS + DA].set(jnp.asarray(p["c_wh"], f32)))
    # bf16 slab: native single-pass MXU operand, half the weight-slab DMA bytes
    w_slab = jnp.concatenate([w1, w2, wh], axis=0).astype(jnp.bfloat16)  # (384, 128)

    s_std = jnp.exp(jnp.asarray(p["s_ls"], f32).reshape(DS)) / 5.0
    c_std = jnp.exp(jnp.asarray(p["c_ls"], f32).reshape(DA))
    return dict(w=w_slab, small=small, s_std=s_std, c_std=c_std)


# ----------------------------------------------------------------------------
# Forward wrapper: pack activation, call pallas_call (batch-tiled), slice.
# ----------------------------------------------------------------------------
def evo_policy_forward(stage_ind, scale_state, sim_obs, packed, *, block_b=2048):
    B = scale_state.shape[0]
    B8 = _rup(max(B, 8), 8)
    if B8 <= 256:
        TB = B8                       # small batch: one tile, one grid step
    else:
        # >= 2 grid steps so v7x's two TensorCores both get batch rows; tile is
        # a multiple of 256 (full-height MXU on v6e/v7x) and capped at block_b.
        # At TB=2048 total VMEM is ~4.5 MiB -- far under every generation's limit.
        TB = min(block_b, _rup(_cdiv(B8, 2), 256))
    Bp = _rup(B8, TB)

    # Lane-dense (Bp,128) activation slab assembled in one concat (+ row pad):
    # lanes 0-7 = scale_state, lanes 8-31 = sim_obs, lanes 32-127 = 0.
    x = jnp.concatenate(
        [jnp.asarray(scale_state, jnp.float32),
         jnp.asarray(sim_obs, jnp.float32),
         jnp.zeros((B, LANES - DS - DC), jnp.float32)], axis=1)
    if Bp > B:
        x = jnp.pad(x, ((0, Bp - B), (0, 0)))

    # Grid-invariant params: pin to block (0,0) (stay VMEM-resident) and request
    # single-buffering -- their index_map is constant so no re-DMA is needed.
    def pinned(shape):
        try:
            return pl.BlockSpec(shape, lambda i: (0, 0),
                                pipeline_mode=pl.Buffered(1))
        except TypeError:  # older jax without the pipeline_mode kwarg
            return pl.BlockSpec(shape, lambda i: (0, 0))

    out = pl.pallas_call(
        policy_kernel,
        out_shape=jax.ShapeDtypeStruct((Bp, LANES), jnp.float32),
        grid=(Bp // TB,),
        in_specs=[
            pl.BlockSpec((TB, LANES), lambda i: (i, 0)),    # activations
            pinned((3 * LANES, LANES)),                     # bf16 weight slab
            pinned((8, LANES)),                             # small f32 params
        ],
        out_specs=pl.BlockSpec((TB, LANES), lambda i: (i, 0)),
        compiler_params=pltpu.CompilerParams(
            dimension_semantics=("parallel",)),
    )(x, packed["w"], packed["small"])

    s_mean = out[:B, :DS]
    c_mean = out[:B, DS:DS + DA]
    # constant stds: exp(log_std) broadcasts done in plain JAX, not in-kernel
    s_std = jnp.broadcast_to(packed["s_std"], (B, DS))
    c_std = jnp.broadcast_to(packed["c_std"], (B, DA))

    # design masks (stages = ['scale_transform', 'execution']); truncation
    # matches the PyTorch `int(x_i[0].item())`
    stage = jnp.asarray(stage_ind, jnp.float32).reshape(B).astype(jnp.int32)
    design_mask = {"scale_transform": stage == 0, "execution": stage == 1}
    return s_mean, s_std, c_mean, c_std, design_mask


# ----------------------------------------------------------------------------
# Deterministic parameter init (mirrors __init__ shapes & .mul_ tweaks)
# ----------------------------------------------------------------------------
def init_params(key):
    ks = jax.random.split(key, 10)

    def linear(k, din, dout, wscale=1.0, bscale=1.0):
        kw, kb = jax.random.split(k)
        bound = 1.0 / jnp.sqrt(jnp.float32(din))
        w = jax.random.uniform(kw, (din, dout), jnp.float32, -bound, bound) * wscale
        b = jax.random.uniform(kb, (dout,), jnp.float32, -bound, bound) * bscale
        return w, b

    s_w1, s_b1 = linear(ks[0], DS, H)
    s_w2, s_b2 = linear(ks[1], H, H)
    s_wh, s_bh = linear(ks[2], H, DS, wscale=1.0, bscale=0.0)   # weight*1, bias*0
    c_w1, c_b1 = linear(ks[3], DC, H)
    c_w2, c_b2 = linear(ks[4], H, H)
    c_wh, c_bh = linear(ks[5], H, DA, wscale=0.1, bscale=0.0)   # weight*0.1, bias*0

    return dict(
        s_nm=0.1 * jax.random.normal(ks[6], (DS,), jnp.float32),
        s_ns=1.0 + 0.1 * jnp.abs(jax.random.normal(ks[7], (DS,), jnp.float32)),
        c_nm=0.1 * jax.random.normal(ks[8], (DC,), jnp.float32),
        c_ns=1.0 + 0.1 * jnp.abs(jax.random.normal(ks[9], (DC,), jnp.float32)),
        s_w1=s_w1, s_b1=s_b1, s_w2=s_w2, s_b2=s_b2, s_wh=s_wh, s_bh=s_bh,
        s_ls=jnp.full((1, DS), SCALE_LOG_STD, jnp.float32),
        c_w1=c_w1, c_b1=c_b1, c_w2=c_w2, c_b2=c_b2, c_wh=c_wh, c_bh=c_bh,
        c_ls=jnp.full((1, DA), CONTROL_LOG_STD, jnp.float32),
    )


# pure-JAX f32 reference of the same math (un-fused) for validation
def ref_forward(scale_state, sim_obs, p):
    def norm(x, m, s):
        return jnp.clip((x - m) / (s + EPS), -CLIP, CLIP)

    x = norm(scale_state, p["s_nm"], p["s_ns"])
    h = jnp.tanh(x @ p["s_w1"] + p["s_b1"])
    h = jnp.tanh(h @ p["s_w2"] + p["s_b2"])
    s_mean = 1.0 + 0.75 * (h @ p["s_wh"] + p["s_bh"])
    s_std = jnp.broadcast_to(jnp.exp(p["s_ls"]) / 5.0, s_mean.shape)

    x = norm(sim_obs, p["c_nm"], p["c_ns"])
    h = jnp.tanh(x @ p["c_w1"] + p["c_b1"])
    h = jnp.tanh(h @ p["c_w2"] + p["c_b2"])
    c_mean = h @ p["c_wh"] + p["c_bh"]
    c_std = jnp.broadcast_to(jnp.exp(p["c_ls"]), c_mean.shape)
    return s_mean, s_std, c_mean, c_std


if __name__ == "__main__":
    key = jax.random.PRNGKey(0)
    kp, k1, k2 = jax.random.split(key, 3)
    params = init_params(kp)
    packed = jax.tree_util.tree_map(jax.device_put, pack_params(params))  # once, off hot path

    B = 4
    # each sample is (stage_ind, scale_state[8], sim_obs[24]); stage 0/1 alternating
    stage_ind = jnp.array([[0.0], [1.0], [0.0], [1.0]], jnp.float32)
    scale_state = jax.random.normal(k1, (B, DS), jnp.float32)
    sim_obs = jax.random.normal(k2, (B, DC), jnp.float32)

    s_mean, s_std, c_mean, c_std, design_mask = evo_policy_forward(
        stage_ind, scale_state, sim_obs, packed)
    jax.block_until_ready((s_mean, s_std, c_mean, c_std))

    rs_mean, rs_std, rc_mean, rc_std = ref_forward(scale_state, sim_obs, params)

    # means go through bf16 matmul operands -> loosened tolerance (~1e-2 scale);
    # stds never pass through the kernel -> tight tolerance.
    ok = (
        jnp.allclose(s_mean, rs_mean, atol=3e-2, rtol=3e-2)
        and jnp.allclose(s_std, rs_std, atol=1e-5, rtol=1e-5)
        and jnp.allclose(c_mean, rc_mean, atol=3e-2, rtol=3e-2)
        and jnp.allclose(c_std, rc_std, atol=1e-5, rtol=1e-5)
        and bool(jnp.all(design_mask["scale_transform"] == (stage_ind[:, 0] == 0)))
        and bool(jnp.all(design_mask["execution"] == (stage_ind[:, 0] == 1)))
    )
    assert ok, "Pallas kernel output mismatch vs JAX reference"
    print("KERNEL_OK")
</pallas_src>

<mosaic_0001>
module attributes {stable_mosaic.version = 11 : i64} {
  func.func @policy_kernel(%arg0: i32, %arg1: memref<8x128xf32, #tpu.memory_space<vmem>>, %arg2: memref<384x128xbf16, #tpu.memory_space<vmem>>, %arg3: memref<8x128xf32, #tpu.memory_space<vmem>>, %arg4: memref<8x128xf32, #tpu.memory_space<vmem>>) attributes {dimension_semantics = [#tpu.dimension_semantics<parallel>], iteration_bounds = array<i64: 1>, scalar_prefetch = 0 : i64, scratch_operands = 0 : i64, tpu.core_type = #tpu.core_type<tc>, window_params = [{transform_indices = @transform_0, window_bounds = array<i64: 8, 128>}, {pipeline_mode = #tpu.pipeline_mode<synchronous>, transform_indices = @transform_1, window_bounds = array<i64: 384, 128>}, {pipeline_mode = #tpu.pipeline_mode<synchronous>, transform_indices = @transform_2, window_bounds = array<i64: 8, 128>}, {transform_indices = @transform_3, window_bounds = array<i64: 8, 128>}]} {
    %c0 = arith.constant 0 : index
    %c0_0 = arith.constant 0 : index
    %0 = vector.load %arg1[%c0, %c0_0] : memref<8x128xf32, #tpu.memory_space<vmem>>, vector<8x128xf32>
    %c0_1 = arith.constant 0 : index
    %c0_2 = arith.constant 0 : index
    %1 = vector.load %arg3[%c0_1, %c0_2] : memref<8x128xf32, #tpu.memory_space<vmem>>, vector<1x128xf32>
    %2 = vector.broadcast %1 : vector<1x128xf32> to vector<8x128xf32>
    %3 = arith.subf %0, %2 : vector<8x128xf32>
    %c1 = arith.constant 1 : index
    %c0_3 = arith.constant 0 : index
    %4 = vector.load %arg3[%c1, %c0_3] : memref<8x128xf32, #tpu.memory_space<vmem>>, vector<1x128xf32>
    %5 = vector.broadcast %4 : vector<1x128xf32> to vector<8x128xf32>
    %6 = arith.mulf %3, %5 : vector<8x128xf32>
    %cst = arith.constant -5.000000e+00 : f32
    %cst_4 = arith.constant 5.000000e+00 : f32
    %7 = vector.broadcast %cst : f32 to vector<8x128xf32>
    %8 = arith.maximumf %7, %6 : vector<8x128xf32>
    %9 = vector.broadcast %cst_4 : f32 to vector<8x128xf32>
    %10 = arith.minimumf %9, %8 : vector<8x128xf32>
    %11 = arith.truncf %10 : vector<8x128xf32> to vector<8x128xbf16>
    %c0_5 = arith.constant 0 : index
    %c0_6 = arith.constant 0 : index
    %12 = vector.load %arg2[%c0_5, %c0_6] : memref<384x128xbf16, #tpu.memory_space<vmem>>, vector<128x128xbf16>
    %cst_7 = arith.constant dense<0.000000e+00> : vector<8x128xf32>
    %13 = tpu.matmul %11, %12, %cst_7 {dimension_numbers = #tpu.dot_dimension_numbers<[1], [0], [0], [1], [0, 0, 1, 1], [], []>} : vector<8x128xbf16>, vector<128x128xbf16>, vector<8x128xf32> -> vector<8x128xf32>
    %c2 = arith.constant 2 : index
    %c0_8 = arith.constant 0 : index
    %14 = vector.load %arg3[%c2, %c0_8] : memref<8x128xf32, #tpu.memory_space<vmem>>, vector<1x128xf32>
    %15 = vector.broadcast %14 : vector<1x128xf32> to vector<8x128xf32>
    %16 = arith.addf %13, %15 : vector<8x128xf32>
    %17 = math.tanh %16 : vector<8x128xf32>
    %18 = arith.truncf %17 : vector<8x128xf32> to vector<8x128xbf16>
    %c128 = arith.constant 128 : index
    %c0_9 = arith.constant 0 : index
    %19 = vector.load %arg2[%c128, %c0_9] : memref<384x128xbf16, #tpu.memory_space<vmem>>, vector<128x128xbf16>
    %cst_10 = arith.constant dense<0.000000e+00> : vector<8x128xf32>
    %20 = tpu.matmul %18, %19, %cst_10 {dimension_numbers = #tpu.dot_dimension_numbers<[1], [0], [0], [1], [0, 0, 1, 1], [], []>} : vector<8x128xbf16>, vector<128x128xbf16>, vector<8x128xf32> -> vector<8x128xf32>
    %c3 = arith.constant 3 : index
    %c0_11 = arith.constant 0 : index
    %21 = vector.load %arg3[%c3, %c0_11] : memref<8x128xf32, #tpu.memory_space<vmem>>, vector<1x128xf32>
    %22 = vector.broadcast %21 : vector<1x128xf32> to vector<8x128xf32>
    %23 = arith.addf %20, %22 : vector<8x128xf32>
    %24 = math.tanh %23 : vector<8x128xf32>
    %25 = arith.truncf %24 : vector<8x128xf32> to vector<8x128xbf16>
    %c256 = arith.constant 256 : index
    %c0_12 = arith.constant 0 : index
    %26 = vector.load %arg2[%c256, %c0_12] : memref<384x128xbf16, #tpu.memory_space<vmem>>, vector<128x128xbf16>
    %cst_13 = arith.constant dense<0.000000e+00> : vector<8x128xf32>
    %27 = tpu.matmul %25, %26, %cst_13 {dimension_numbers = #tpu.dot_dimension_numbers<[1], [0], [0], [1], [0, 0, 1, 1], [], []>} : vector<8x128xbf16>, vector<128x128xbf16>, vector<8x128xf32> -> vector<8x128xf32>
    %c4 = arith.constant 4 : index
    %c0_14 = arith.constant 0 : index
    %28 = vector.load %arg3[%c4, %c0_14] : memref<8x128xf32, #tpu.memory_space<vmem>>, vector<1x128xf32>
    %29 = vector.broadcast %28 : vector<1x128xf32> to vector<8x128xf32>
    %30 = arith.mulf %27, %29 : vector<8x128xf32>
    %c5 = arith.constant 5 : index
    %c0_15 = arith.constant 0 : index
    %31 = vector.load %arg3[%c5, %c0_15] : memref<8x128xf32, #tpu.memory_space<vmem>>, vector<1x128xf32>
    %32 = vector.broadcast %31 : vector<1x128xf32> to vector<8x128xf32>
    %33 = arith.addf %30, %32 : vector<8x128xf32>
    %c0_16 = arith.constant 0 : index
    %c0_17 = arith.constant 0 : index
    %34 = vector.load %arg4[%c0_16, %c0_17] : memref<8x128xf32, #tpu.memory_space<vmem>>, vector<8x128xf32>
    tpu.vector_store %arg4[%c0_16, %c0_17], %33 {strides = array<i32>} : memref<8x128xf32, #tpu.memory_space<vmem>>, vector<8x128xf32>,
    return
  }
  func.func @transform_0(%arg0: i32) -> (i32, i32) {
    %c0_i32 = arith.constant 0 : i32
    %c0_i32_0 = arith.constant 0 : i32
    return %arg0, %c0_i32 : i32, i32
  }
  func.func @transform_1(%arg0: i32) -> (i32, i32) {
    %c0_i32 = arith.constant 0 : i32
    %c0_i32_0 = arith.constant 0 : i32
    %c0_i32_1 = arith.constant 0 : i32
    return %c0_i32, %c0_i32_0 : i32, i32
  }
  func.func @transform_2(%arg0: i32) -> (i32, i32) {
    %c0_i32 = arith.constant 0 : i32
    %c0_i32_0 = arith.constant 0 : i32
    %c0_i32_1 = arith.constant 0 : i32
    return %c0_i32, %c0_i32_0 : i32, i32
  }
  func.func @transform_3(%arg0: i32) -> (i32, i32) {
    %c0_i32 = arith.constant 0 : i32
    %c0_i32_0 = arith.constant 0 : i32
    return %arg0, %c0_i32 : i32, i32
  }
}

</mosaic_0001>

<llo_original>
// kernel: tpu_custom_call.1
$region0: #{tpu_custom_call.1}
  #allocation0 [shape = 'u32[]', space=smem, size = 0x4, offset = 0x4, fixed_abs, tag = 'smem constant byte address 0x4 - core index']
  #allocation1 [shape = 'u32[72,128]{1,0:T(1,128)}', space=vmem, size = 0x9000, scoped, tag = 'internal scratch']
  %s0 = inlined_call_operand.hbm [shape: f32[8,128], index: 0, kind: input, shape index: {}]
  %s1 = inlined_call_operand.hbm [shape: bf16[384,128], index: 1, kind: input, shape index: {}]
  %s2 = inlined_call_operand.hbm [shape: f32[8,128], index: 2, kind: input, shape index: {}]
  %s3 = inlined_call_operand.hbm [shape: f32[8,128], index: 3, kind: output, shape index: {}]
  %s4 = sld [smem:[#allocation0]]
  $region34: #{tpu_custom_call.1} parent=0
    _
  %s6 = ssub.s32 1, %s4
  %s7 = scalar_select 0, %s6, %s4
  $region1: #{tpu_custom_call.1} parent=0
    #allocation2 [shape = 'u8[4096]{0}', space=vmem, size = 0x1000, scoped, tag = 'input window, operand 0, single buffered']
    #allocation3 [shape = 's32[1]{0}', space=sflag, size = 0x4, scoped, tag = 'scoped memory for tpu_custom_call.1']
    #allocation4 [shape = 's32[1]{0}', space=sflag, size = 0x4, scoped, tag = 'scoped memory for tpu_custom_call.1']
    #allocation5 [shape = 'u8[98304]{0}', space=vmem, size = 0x18000, scoped, tag = 'input window, operand 1, single buffered']
    #allocation6 [shape = 's32[1]{0}', space=sflag, size = 0x4, scoped, tag = 'scoped memory for tpu_custom_call.1']
    #allocation7 [shape = 'u8[4096]{0}', space=vmem, size = 0x1000, scoped, tag = 'input window, operand 2, single buffered']
    #allocation8 [shape = 'u8[4096]{0}', space=vmem, size = 0x1000, scoped, tag = 'output window, operand 0, single buffered']
    %8 = vsyncpa [#allocation3], 0
    %9 = vsyncpa [#allocation6], 0
    %10 = vsyncpa [#allocation4], 0
    // Predicated region
    $region2: #{tpu_custom_call.1} parent=1 // pred_check
      _
    $region3: #{tpu_custom_call.1} parent=1 // pred_check_branch
      %12 = sbr.rel (0) target = $region5
    $region4: #{tpu_custom_call.1} parent=1 // pred_region
      %14 = vsyncadd [#allocation3], 0
      %s16 = sshll.u32 %s0, 4
      %s17 = int_to_ptr.hbm [resolvable:$true] %s16
      %s18 = sshll.u32 [#allocation2], 4
      %s19 = int_to_ptr.vmem [resolvable:$true] %s18
      %21 = dma.hbm_to_vmem [thread:$0]  %s17, 128, %s19, [#allocation3]
    $region5: #{tpu_custom_call.1} parent=1 // pred_fallthru
      _
    // Predicated region
    $region6: #{tpu_custom_call.1} parent=1 // pred_check
      _
    $region7: #{tpu_custom_call.1} parent=1 // pred_check_branch
      %23 = sbr.rel (0) target = $region9
    $region8: #{tpu_custom_call.1} parent=1 // pred_region
      %25 = vsyncadd [#allocation6], 0
      %s26 = sshll.u32 %s1, 4
      %s27 = int_to_ptr.hbm [resolvable:$true] %s26
      %s28 = sshll.u32 [#allocation5], 4
      %s29 = int_to_ptr.vmem [resolvable:$true] %s28
      %34 = dma.hbm_to_vmem [thread:$0]  %s27, 3072, %s29, [#allocation6], 64, 64, 4
    $region9: #{tpu_custom_call.1} parent=1 // pred_fallthru
      _
    // Predicated region
    $region10: #{tpu_custom_call.1} parent=1 // pred_check
      _
    $region11: #{tpu_custom_call.1} parent=1 // pred_check_branch
      %36 = sbr.rel (0) target = $region13
    $region12: #{tpu_custom_call.1} parent=1 // pred_region
      %38 = vsyncadd [#allocation6], 0
      %s40 = sshll.u32 %s2, 4
      %s41 = int_to_ptr.hbm [resolvable:$true] %s40
      %s42 = sshll.u32 [#allocation7], 4
      %s43 = int_to_ptr.vmem [resolvable:$true] %s42
      %45 = dma.hbm_to_vmem [thread:$0]  %s41, 128, %s43, [#allocation6]
    $region13: #{tpu_custom_call.1} parent=1 // pred_fallthru
      _
    // Predicated region
    $region14: #{tpu_custom_call.1} parent=1 // pred_check
      _
    $region15: #{tpu_custom_call.1} parent=1 // pred_check_branch
      %47 = sbr.rel (0) target = $region17
    $region16: #{tpu_custom_call.1} parent=1 // pred_region
      %49 = dma.done [#allocation3], 128
    $region17: #{tpu_custom_call.1} parent=1 // pred_fallthru
      _
    // Predicated region
    $region18: #{tpu_custom_call.1} parent=1 // pred_check
      _
    $region19: #{tpu_custom_call.1} parent=1 // pred_check_branch
      %51 = sbr.rel (0) target = $region21
    $region20: #{tpu_custom_call.1} parent=1 // pred_region
      %53 = dma.done [#allocation6], 3072
    $region21: #{tpu_custom_call.1} parent=1 // pred_fallthru
      _
    // Predicated region
    $region22: #{tpu_custom_call.1} parent=1 // pred_check
      _
    $region23: #{tpu_custom_call.1} parent=1 // pred_check_branch
      %55 = sbr.rel (0) target = $region25
    $region24: #{tpu_custom_call.1} parent=1 // pred_region
      %57 = dma.done [#allocation6], 128
    $region25: #{tpu_custom_call.1} parent=1 // pred_fallthru
      _
    %v58 = vld [vmem:[#allocation2] sm:$0xff]
    %v59 = vld [vmem:[#allocation7] sm:$0x1]
    %v60 = vperm.slane %v59, 0
    %v61 = vsub.f32 %v58, %v60
    %v62 = vld [vmem:[#allocation7 + $0x1] sm:$0x1]
    %v63 = vperm.slane %v62, 0
    %v64 = vmul.f32 %v61, %v63
    %v65 = vmax.f32 %v64, -5.0
    %v66 = vmin.f32 %v65, 5.0
    %v67 = vpack.c.bf16 %v66, %v66
    %v68 = vld [vmem:[#allocation5] sm:$0xf]
    %v69 = vld [vmem:[#allocation5 + $0x4] sm:$0xf]
    %v70 = vld [vmem:[#allocation5 + $0x8] sm:$0xf]
    %v71 = vld [vmem:[#allocation5 + $0xc] sm:$0xf]
    %v72 = vld [vmem:[#allocation5 + $0x10] sm:$0xf]
    %v73 = vld [vmem:[#allocation5 + $0x14] sm:$0xf]
    %v74 = vld [vmem:[#allocation5 + $0x18] sm:$0xf]
    %v75 = vld [vmem:[#allocation5 + $0x1c] sm:$0xf]
    %v76 = vld [vmem:[#allocation5 + $0x20] sm:$0xf]
    %v77 = vld [vmem:[#allocation5 + $0x24] sm:$0xf]
    %v78 = vld [vmem:[#allocation5 + $0x28] sm:$0xf]
    %v79 = vld [vmem:[#allocation5 + $0x2c] sm:$0xf]
    %v80 = vld [vmem:[#allocation5 + $0x30] sm:$0xf]
    %v81 = vld [vmem:[#allocation5 + $0x34] sm:$0xf]
    %v82 = vld [vmem:[#allocation5 + $0x38] sm:$0xf]
    %v83 = vld [vmem:[#allocation5 + $0x3c] sm:$0xf]
    %v84 = vld [vmem:[#allocation7 + $0x2] sm:$0x1]
    %v85 = vperm.slane %v84, 0
    %v102 = vunpack.c.l.b16 %v68
    %v103 = vunpack.c.l.b16 %v69
    %v104 = vunpack.c.l.b16 %v70
    %v105 = vunpack.c.l.b16 %v71
    %v106 = vunpack.c.l.b16 %v72
    %v107 = vunpack.c.l.b16 %v73
    %v108 = vunpack.c.l.b16 %v74
    %v109 = vunpack.c.l.b16 %v75
    %v110 = vunpack.c.l.b16 %v76
    %v111 = vunpack.c.l.b16 %v77
    %v112 = vunpack.c.l.b16 %v78
    %v113 = vunpack.c.l.b16 %v79
    %v114 = vunpack.c.l.b16 %v80
    %v115 = vunpack.c.l.b16 %v81
    %v116 = vunpack.c.l.b16 %v82
    %v117 = vunpack.c.l.b16 %v83
    %v118 = vpack.c.b16 %v103, %v102
    %v119 = vpack.c.b16 %v105, %v104
    %v120 = vpack.c.b16 %v107, %v106
    %v121 = vpack.c.b16 %v109, %v108
    %v122 = vpack.c.b16 %v111, %v110
    %v123 = vpack.c.b16 %v113, %v112
    %v124 = vpack.c.b16 %v115, %v114
    %v125 = vpack.c.b16 %v117, %v116
    %134 = vmatpush.bf16.msra.mxu0 %v125
    %135 = vmatpush.bf16.msra.mxu0 %v124
    %136 = vmatpush.bf16.msra.mxu0 %v123
    %137 = vmatpush.bf16.msra.mxu0 %v122
    %138 = vmatpush.bf16.msra.mxu0 %v121
    %139 = vmatpush.bf16.msra.mxu0 %v120
    %140 = vmatpush.bf16.msra.mxu0 %v119
    %141 = vmatpush.bf16.msra.mxu0 %v118
    %142 = vmatmul.bf16.gmra.mxu0 %v67
    %v143 = vpop.f32.mrf.mxu0
    %v144 = vadd.f32 %v85, %v143
    %v145 = vpop.f32.mrf.mxu0
    %146 = vdwg.mxu0
    %v147 = vtanh.pop %v144
    %v148 = vpack.c.bf16 %v147, %v147
    %v149 = vld [vmem:[#allocation5 + $0x40] sm:$0xf]
    %v150 = vld [vmem:[#allocation5 + $0x44] sm:$0xf]
    %v151 = vld [vmem:[#allocation5 + $0x48] sm:$0xf]
    %v152 = vld [vmem:[#allocation5 + $0x4c] sm:$0xf]
    %v153 = vld [vmem:[#allocation5 + $0x50] sm:$0xf]
    %v154 = vld [vmem:[#allocation5 + $0x54] sm:$0xf]
    %v155 = vld [vmem:[#allocation5 + $0x58] sm:$0xf]
    %v156 = vld [vmem:[#allocation5 + $0x5c] sm:$0xf]
    %v157 = vld [vmem:[#allocation5 + $0x60] sm:$0xf]
    %v158 = vld [vmem:[#allocation5 + $0x64] sm:$0xf]
    %v159 = vld [vmem:[#allocation5 + $0x68] sm:$0xf]
    %v160 = vld [vmem:[#allocation5 + $0x6c] sm:$0xf]
    %v161 = vld [vmem:[#allocation5 + $0x70] sm:$0xf]
    %v162 = vld [vmem:[#allocation5 + $0x74] sm:$0xf]
    %v163 = vld [vmem:[#allocation5 + $0x78] sm:$0xf]
    %v164 = vld [vmem:[#allocation5 + $0x7c] sm:$0xf]
    %v165 = vld [vmem:[#allocation7 + $0x3] sm:$0x1]
    %v166 = vperm.slane %v165, 0
    %v183 = vunpack.c.l.b16 %v149
    %v184 = vunpack.c.l.b16 %v150
    %v185 = vunpack.c.l.b16 %v151
    %v186 = vunpack.c.l.b16 %v152
    %v187 = vunpack.c.l.b16 %v153
    %v188 = vunpack.c.l.b16 %v154
    %v189 = vunpack.c.l.b16 %v155
    %v190 = vunpack.c.l.b16 %v156
    %v191 = vunpack.c.l.b16 %v157
    %v192 = vunpack.c.l.b16 %v158
    %v193 = vunpack.c.l.b16 %v159
    %v194 = vunpack.c.l.b16 %v160
    %v195 = vunpack.c.l.b16 %v161
    %v196 = vunpack.c.l.b16 %v162
    %v197 = vunpack.c.l.b16 %v163
    %v198 = vunpack.c.l.b16 %v164
    %v199 = vpack.c.b16 %v184, %v183
    %v200 = vpack.c.b16 %v186, %v185
    %v201 = vpack.c.b16 %v188, %v187
    %v202 = vpack.c.b16 %v190, %v189
    %v203 = vpack.c.b16 %v192, %v191
    %v204 = vpack.c.b16 %v194, %v193
    %v205 = vpack.c.b16 %v196, %v195
    %v206 = vpack.c.b16 %v198, %v197
    %215 = vmatpush.bf16.msra.mxu0 %v206
    %216 = vmatpush.bf16.msra.mxu0 %v205
    %217 = vmatpush.bf16.msra.mxu0 %v204
    %218 = vmatpush.bf16.msra.mxu0 %v203
    %219 = vmatpush.bf16.msra.mxu0 %v202
    %220 = vmatpush.bf16.msra.mxu0 %v201
    %221 = vmatpush.bf16.msra.mxu0 %v200
    %222 = vmatpush.bf16.msra.mxu0 %v199
    %223 = vmatmul.bf16.gmra.mxu0 %v148
    %v224 = vpop.f32.mrf.mxu0
    %v225 = vadd.f32 %v166, %v224
    %v226 = vpop.f32.mrf.mxu0
    %227 = vdwg.mxu0
    %v228 = vtanh.pop %v225
    %v229 = vpack.c.bf16 %v228, %v228
    %v230 = vld [vmem:[#allocation5 + $0x80] sm:$0xf]
    %v231 = vld [vmem:[#allocation5 + $0x84] sm:$0xf]
    %v232 = vld [vmem:[#allocation5 + $0x88] sm:$0xf]
    %v233 = vld [vmem:[#allocation5 + $0x8c] sm:$0xf]
    %v234 = vld [vmem:[#allocation5 + $0x90] sm:$0xf]
    %v235 = vld [vmem:[#allocation5 + $0x94] sm:$0xf]
    %v236 = vld [vmem:[#allocation5 + $0x98] sm:$0xf]
    %v237 = vld [vmem:[#allocation5 + $0x9c] sm:$0xf]
    %v238 = vld [vmem:[#allocation5 + $0xa0] sm:$0xf]
    %v239 = vld [vmem:[#allocation5 + $0xa4] sm:$0xf]
    %v240 = vld [vmem:[#allocation5 + $0xa8] sm:$0xf]
    %v241 = vld [vmem:[#allocation5 + $0xac] sm:$0xf]
    %v242 = vld [vmem:[#allocation5 + $0xb0] sm:$0xf]
    %v243 = vld [vmem:[#allocation5 + $0xb4] sm:$0xf]
    %v244 = vld [vmem:[#allocation5 + $0xb8] sm:$0xf]
    %v245 = vld [vmem:[#allocation5 + $0xbc] sm:$0xf]
    %v262 = vunpack.c.l.b16 %v230
    %v263 = vunpack.c.l.b16 %v231
    %v264 = vunpack.c.l.b16 %v232
    %v265 = vunpack.c.l.b16 %v233
    %v266 = vunpack.c.l.b16 %v234
    %v267 = vunpack.c.l.b16 %v235
    %v268 = vunpack.c.l.b16 %v236
    %v269 = vunpack.c.l.b16 %v237
    %v270 = vunpack.c.l.b16 %v238
    %v271 = vunpack.c.l.b16 %v239
    %v272 = vunpack.c.l.b16 %v240
    %v273 = vunpack.c.l.b16 %v241
    %v274 = vunpack.c.l.b16 %v242
    %v275 = vunpack.c.l.b16 %v243
    %v276 = vunpack.c.l.b16 %v244
    %v277 = vunpack.c.l.b16 %v245
    %v278 = vpack.c.b16 %v263, %v262
    %v279 = vpack.c.b16 %v265, %v264
    %v280 = vpack.c.b16 %v267, %v266
    %v281 = vpack.c.b16 %v269, %v268
    %v282 = vpack.c.b16 %v271, %v270
    %v283 = vpack.c.b16 %v273, %v272
    %v284 = vpack.c.b16 %v275, %v274
    %v285 = vpack.c.b16 %v277, %v276
    %294 = vmatpush.bf16.msra.mxu0 %v285
    %295 = vmatpush.bf16.msra.mxu0 %v284
    %296 = vmatpush.bf16.msra.mxu0 %v283
    %297 = vmatpush.bf16.msra.mxu0 %v282
    %298 = vmatpush.bf16.msra.mxu0 %v281
    %299 = vmatpush.bf16.msra.mxu0 %v280
    %300 = vmatpush.bf16.msra.mxu0 %v279
    %301 = vmatpush.bf16.msra.mxu0 %v278
    %302 = vmatmul.bf16.gmra.mxu0 %v229
    %v303 = vpop.f32.mrf.mxu0
    %v304 = vadd.f32 0.0, %v303
    %v305 = vpop.f32.mrf.mxu0
    %306 = vdwg.mxu0
    %v307 = vld [vmem:[#allocation7 + $0x4] sm:$0x1]
    %v308 = vperm.slane %v307, 0
    %v309 = vmul.f32 %v304, %v308
    %v310 = vld [vmem:[#allocation7 + $0x5] sm:$0x1]
    %v311 = vperm.slane %v310, 0
    %v312 = vadd.f32 %v309, %v311
    %313 = vst [vmem:[#allocation8] sm:$0xff] %v312
    // Predicated region
    $region26: #{tpu_custom_call.1} parent=1 // pred_check
      _
    $region27: #{tpu_custom_call.1} parent=1 // pred_check_branch
      %315 = sbr.rel (0) target = $region29
    $region28: #{tpu_custom_call.1} parent=1 // pred_region
      %317 = vsyncadd [#allocation4], 0
      %s319 = sshll.u32 [#allocation8], 4
      %s320 = int_to_ptr.vmem [resolvable:$true] %s319
      %s321 = sshll.u32 %s3, 4
      %s322 = int_to_ptr.hbm [resolvable:$true] %s321
      %324 = dma.vmem_to_hbm [thread:$0]  %s320, 128, %s322, [#allocation4]
    $region29: #{tpu_custom_call.1} parent=1 // pred_fallthru
      _
    // Predicated region
    $region30: #{tpu_custom_call.1} parent=1 // pred_check
      _
    $region31: #{tpu_custom_call.1} parent=1 // pred_check_branch
      %326 = sbr.rel (0) target = $region33
    $region32: #{tpu_custom_call.1} parent=1 // pred_region
      %328 = dma.done [#allocation4], 128
    $region33: #{tpu_custom_call.1} parent=1 // pred_fallthru
      _
    %329 = vsyncpa [#allocation3], 1
    %330 = vsyncpa [#allocation6], 1
    %331 = vsyncpa [#allocation4], 1

</llo_original>
